<compile_context>
chip_gen: v6e
topology: v6e:2x2x1
jax: 0.10.0
libtpu: 0.0.40
codegen_flags: <defaults>
</compile_context>

<pallas_src>
import functools

import jax
import jax.numpy as jnp
from jax.experimental import pallas as pl
from jax.experimental.pallas import tpu as pltpu

_LANE = 512   # lane width of the 2-D slab (multiple of 128 -> lane-dense stores)


def _aq_kernel(alpha_ref, x_ref, o_ref, *, levels):
    """Clamp + uniform quantize of one (tile_rows, LANE) tile."""
    alpha = alpha_ref[0]                 # (1,) SMEM scalar
    scale = levels / alpha               # once per tile, scalar
    inv_scale = alpha / levels           # once per tile, scalar (mul instead of per-elem div)
    x = x_ref[...].astype(jnp.float32)
    x_c = jnp.where(x < alpha, x, alpha)                       # upper-side clamp (NaN -> alpha)
    o_ref[...] = (jnp.round(x_c * scale) * inv_scale).astype(o_ref.dtype)


def _tile_rows(itemsize):
    """Pick tile rows so one tile is ~4 MiB on v6e/v7x and ~2 MiB elsewhere."""
    kind = ""
    try:
        kind = jax.devices()[0].device_kind.lower()
    except Exception:
        pass
    # 2 in + 2 out double buffers = 4x tile bytes:
    #   4 MiB tiles -> 16 MiB buffers, fits v6e/v7x 32 MiB scoped-VMEM default.
    #   2 MiB tiles ->  8 MiB buffers, fits v5e's 16 MiB scoped-VMEM default.
    tile_bytes = (4 << 20) if ("v6" in kind or "v7" in kind) else (2 << 20)
    rows = tile_bytes // (_LANE * itemsize)
    return max(8, (rows // 8) * 8)


def aq_forward(x, alpha, abit):
    """Pallas implementation of AQ.forward.

    x     : (B, C, H, W) activations, NCHW like PyTorch
    alpha : (1,) float32 learned clipping scalar
    abit  : python int, activation bit-width
    """
    orig_shape = x.shape
    C = x.shape[1]

    # Static identity paths (same as the PyTorch module).
    if C <= 3 or abit == 32:
        return x

    levels = float(2 ** abit - 1)
    alpha_f = alpha.astype(jnp.float32).reshape(1)
    itemsize = jnp.dtype(x.dtype).itemsize

    total = x.size
    rows = total // _LANE                # lane-aligned prefix rows
    tail_len = total - rows * _LANE      # ragged tail (< _LANE elements)

    x_flat = x.reshape(-1)               # bitcast, free
    pieces = []

    if rows > 0:
        main_len = rows * _LANE
        x_main = x_flat if tail_len == 0 else x_flat[:main_len]
        x2d = x_main.reshape(rows, _LANE)

        tr = min(_tile_rows(itemsize), rows)   # rows < tr -> single full-array block
        grid = (pl.cdiv(rows, tr),)            # boundary block (if any) is padded by Pallas

        out2d = pl.pallas_call(
            functools.partial(_aq_kernel, levels=levels),
            out_shape=jax.ShapeDtypeStruct((rows, _LANE), x.dtype),
            grid=grid,
            in_specs=[
                pl.BlockSpec(memory_space=pltpu.MemorySpace.SMEM),   # alpha scalar
                pl.BlockSpec((tr, _LANE), lambda i: (i, 0)),
            ],
            out_specs=pl.BlockSpec((tr, _LANE), lambda i: (i, 0)),
            compiler_params=pltpu.CompilerParams(
                # 1 TC on v5e/v6e (no-op); on v7x lets the grid shard across both TCs.
                dimension_semantics=("parallel",),
            ),
            cost_estimate=pl.CostEstimate(
                flops=5 * rows * _LANE,
                transcendentals=0,
                bytes_accessed=2 * rows * _LANE * itemsize,
            ),
        )(alpha_f, x2d)
        pieces.append(out2d.reshape(-1))

    if tail_len > 0:
        # Ragged tail (< 512 elements): one tiny fused XLA elementwise op is cheaper
        # than a dedicated pad + pallas_call + slice-back for so few elements.
        x_tail = x_flat[rows * _LANE:]
        a = alpha_f[0]
        s = levels / a
        x_c = jnp.where(x_tail < a, x_tail, a)
        pieces.append((jnp.round(x_c * s) / s).astype(x.dtype))

    out_flat = pieces[0] if len(pieces) == 1 else jnp.concatenate(pieces)
    return out_flat.reshape(orig_shape)


if __name__ == "__main__":
    abit = 4
    alpha_init = 10.0                     # deterministic parameter init (AQ.__init__)
    alpha = jnp.array([alpha_init], dtype=jnp.float32)
    levels = 2.0 ** abit - 1.0

    def reference(x):
        a = alpha[0]
        xc = jnp.where(x < a, x, a)
        s = levels / a
        return jnp.round(xc * s) / s

    # Case 1: C > 3 and abit != 32 -> quantization path, lane-aligned size.
    key = jax.random.PRNGKey(0)
    B, C, H, W = 2, 4, 16, 16
    x = jax.random.normal(key, (B, C, H, W), dtype=jnp.float32) * 5.0
    out = jax.block_until_ready(aq_forward(x, alpha, abit))
    assert out.shape == x.shape and out.dtype == x.dtype
    assert jnp.allclose(out, reference(x), atol=1e-5, rtol=1e-5), "mismatch (aligned)"

    # Case 2: total size not a multiple of 512 -> exercises the ragged-tail path.
    x2 = jax.random.normal(jax.random.PRNGKey(1), (2, 5, 7, 9), dtype=jnp.float32) * 5.0
    out2 = jax.block_until_ready(aq_forward(x2, alpha, abit))
    assert out2.shape == x2.shape
    assert jnp.allclose(out2, reference(x2), atol=1e-5, rtol=1e-5), "mismatch (tail)"

    # Case 3: identity path (C <= 3).
    x3 = jax.random.normal(jax.random.PRNGKey(2), (2, 3, 16, 16), dtype=jnp.float32)
    out3 = jax.block_until_ready(aq_forward(x3, alpha, abit))
    assert jnp.array_equal(out3, x3), "identity path changed values"

    # Case 4: multi-step grid with a partial boundary tile (rows not a multiple of
    # the tile rows on any generation) -> exercises Pallas boundary-block padding.
    x4 = jax.random.normal(jax.random.PRNGKey(3), (16, 66, 32, 32), dtype=jnp.float32) * 5.0
    out4 = jax.block_until_ready(aq_forward(x4, alpha, abit))
    assert out4.shape == x4.shape
    assert jnp.allclose(out4, reference(x4), atol=1e-5, rtol=1e-5), "mismatch (partial tile)"

    print("KERNEL_OK")
</pallas_src>

<mosaic_0001>
module attributes {stable_mosaic.version = 11 : i64} {
  func.func @_aq_kernel(%arg0: i32, %arg1: memref<1xf32, #tpu.memory_space<smem>>, %arg2: memref<4x512xf32, #tpu.memory_space<vmem>>, %arg3: memref<4x512xf32, #tpu.memory_space<vmem>>) attributes {dimension_semantics = [#tpu.dimension_semantics<parallel>], iteration_bounds = array<i64: 1>, scalar_prefetch = 0 : i64, scratch_operands = 0 : i64, tpu.core_type = #tpu.core_type<tc>, window_params = [{transform_indices = @transform_0, window_bounds = array<i64: 1>}, {transform_indices = @transform_1, window_bounds = array<i64: 4, 512>}, {transform_indices = @transform_2, window_bounds = array<i64: 4, 512>}]} {
    %c0 = arith.constant 0 : index
    %0 = memref.load %arg1[%c0] : memref<1xf32, #tpu.memory_space<smem>>
    %cst = arith.constant 1.500000e+01 : f32
    %1 = arith.divf %cst, %0 : f32
    %cst_0 = arith.constant 1.500000e+01 : f32
    %2 = arith.divf %0, %cst_0 : f32
    %c0_1 = arith.constant 0 : index
    %c0_2 = arith.constant 0 : index
    %3 = vector.load %arg2[%c0_1, %c0_2] : memref<4x512xf32, #tpu.memory_space<vmem>>, vector<4x512xf32>
    %4 = vector.broadcast %0 : f32 to vector<4x512xf32>
    %5 = arith.cmpf olt, %3, %4 : vector<4x512xf32>
    %6 = vector.broadcast %0 : f32 to vector<4x512xf32>
    %7 = arith.select %5, %3, %6 : vector<4x512xi1>, vector<4x512xf32>
    %8 = vector.broadcast %1 : f32 to vector<4x512xf32>
    %9 = arith.mulf %7, %8 : vector<4x512xf32>
    %10 = math.roundeven %9 : vector<4x512xf32>
    %11 = vector.broadcast %2 : f32 to vector<4x512xf32>
    %12 = arith.mulf %10, %11 : vector<4x512xf32>
    %c0_3 = arith.constant 0 : index
    %c0_4 = arith.constant 0 : index
    %13 = vector.load %arg3[%c0_3, %c0_4] : memref<4x512xf32, #tpu.memory_space<vmem>>, vector<4x512xf32>
    tpu.vector_store %arg3[%c0_3, %c0_4], %12 {strides = array<i32>} : memref<4x512xf32, #tpu.memory_space<vmem>>, vector<4x512xf32>,
    return
  }
  func.func @transform_0(%arg0: i32) -> i32 {
    %c0_i32 = arith.constant 0 : i32
    %c0_i32_0 = arith.constant 0 : i32
    return %c0_i32 : i32
  }
  func.func @transform_1(%arg0: i32) -> (i32, i32) {
    %c0_i32 = arith.constant 0 : i32
    %c0_i32_0 = arith.constant 0 : i32
    return %arg0, %c0_i32 : i32, i32
  }
  func.func @transform_2(%arg0: i32) -> (i32, i32) {
    %c0_i32 = arith.constant 0 : i32
    %c0_i32_0 = arith.constant 0 : i32
    return %arg0, %c0_i32 : i32, i32
  }
}

</mosaic_0001>

<llo_original>
// kernel: tpu_custom_call.1
$region0: #{tpu_custom_call.1}
  #allocation0 [shape = 'u32[]', space=smem, size = 0x4, offset = 0x4, fixed_abs, tag = 'smem constant byte address 0x4 - core index']
  #allocation1 [shape = 'u32[144,128]{1,0:T(1,128)}', space=vmem, size = 0x12000, scoped, tag = 'internal scratch']
  #allocation2 [shape = 'f32[1]{0:T(128)S(6)}', space=smem, size = 0x200, scoped, tag = 'scoped memory for tpu_custom_call.1']
  %s0 = inlined_call_operand.<no memory space> [shape: f32[1], index: 0, kind: input, shape index: {}]
  %s1 = inlined_call_operand.hbm [shape: f32[4,512], index: 1, kind: input, shape index: {}]
  %s2 = inlined_call_operand.hbm [shape: f32[4,512], index: 2, kind: output, shape index: {}]
  %s3 = sld [smem:[#allocation0]]
  $region22: #{tpu_custom_call.1} parent=0
    _
  %s5 = ssub.s32 1, %s3
  %s6 = scalar_select 0, %s5, %s3
  %7 = sst [smem:[#allocation2]] %s0
  $region1: #{tpu_custom_call.1} parent=0
    #allocation3 [shape = 'u8[8192]{0}', space=vmem, size = 0x2000, scoped, tag = 'input window, operand 1, single buffered']
    #allocation4 [shape = 's32[1]{0}', space=sflag, size = 0x4, scoped, tag = 'scoped memory for tpu_custom_call.1']
    #allocation5 [shape = 's32[1]{0}', space=sflag, size = 0x4, scoped, tag = 'scoped memory for tpu_custom_call.1']
    #allocation6 [shape = 'u8[8192]{0}', space=vmem, size = 0x2000, scoped, tag = 'output window, operand 0, single buffered']
    %8 = vsyncpa [#allocation4], 0
    %9 = vsyncpa [#allocation5], 0
    // Predicated region
    $region2: #{tpu_custom_call.1} parent=1 // pred_check
      _
    $region3: #{tpu_custom_call.1} parent=1 // pred_check_branch
      %11 = sbr.rel (0) target = $region5
    $region4: #{tpu_custom_call.1} parent=1 // pred_region
      _
    $region5: #{tpu_custom_call.1} parent=1 // pred_fallthru
      _
    // Predicated region
    $region6: #{tpu_custom_call.1} parent=1 // pred_check
      _
    $region7: #{tpu_custom_call.1} parent=1 // pred_check_branch
      %13 = sbr.rel (0) target = $region9
    $region8: #{tpu_custom_call.1} parent=1 // pred_region
      %s15 = ssub.s32 256, 256
      %16 = vsyncadd [#allocation4], %s15
      %s18 = sshll.u32 [#allocation3], 4
      %s19 = int_to_ptr.vmem [resolvable:$true] %s18
      %21 = dma.hbm_to_vmem [thread:$0]  %s1, 256, %s19, [#allocation4]
    $region9: #{tpu_custom_call.1} parent=1 // pred_fallthru
      _
    // Predicated region
    $region10: #{tpu_custom_call.1} parent=1 // pred_check
      _
    $region11: #{tpu_custom_call.1} parent=1 // pred_check_branch
      %23 = sbr.rel (0) target = $region13
    $region12: #{tpu_custom_call.1} parent=1 // pred_region
      %24 = dma.done [#allocation4], 256
    $region13: #{tpu_custom_call.1} parent=1 // pred_fallthru
      _
    %s25 = sld [smem:[#allocation2]]
    %v26 = vstv %s25
    %v27 = vrcp.pop %v26
    %s28 = vtos %v27
    %s29 = smul.f32 15.0, %s28
    %v30 = vrcp.pop 15.0
    %s31 = vtos %v30
    %s32 = smul.f32 %s25, %s31
    %v33 = vld [vmem:[#allocation3] sm:$0xff]
    %v34 = vld [vmem:[#allocation3 + $0x8] sm:$0xff]
    %v35 = vstv %s25
    %vm36 = vcmp.lt.f32.partialorder %v33, %v35
    %vm37 = vcmp.lt.f32.partialorder %v34, %v35
    %v38 = vsel %vm36, %v33, %v35
    %v39 = vsel %vm37, %v34, %v35
    %v40 = vstv %s29
    %v41 = vmul.f32 %v38, %v40
    %v42 = vmul.f32 %v39, %v40
    %v43 = vround.ne.pseudo %v41
    %v44 = vround.ne.pseudo %v42
    %v45 = vstv %s32
    %v46 = vmul.f32 %v43, %v45
    %v47 = vmul.f32 %v44, %v45
    %48 = vst [vmem:[#allocation6] sm:$0xff] %v46
    %49 = vst [vmem:[#allocation6 + $0x8] sm:$0xff] %v47
    // Predicated region
    $region14: #{tpu_custom_call.1} parent=1 // pred_check
      _
    $region15: #{tpu_custom_call.1} parent=1 // pred_check_branch
      %51 = sbr.rel (0) target = $region17
    $region16: #{tpu_custom_call.1} parent=1 // pred_region
      %s53 = ssub.s32 256, 256
      %54 = vsyncadd [#allocation5], %s53
      %s56 = sshll.u32 [#allocation6], 4
      %s57 = int_to_ptr.vmem [resolvable:$true] %s56
      %59 = dma.vmem_to_hbm [thread:$0]  %s57, 256, %s2, [#allocation5]
    $region17: #{tpu_custom_call.1} parent=1 // pred_fallthru
      _
    // Predicated region
    $region18: #{tpu_custom_call.1} parent=1 // pred_check
      _
    $region19: #{tpu_custom_call.1} parent=1 // pred_check_branch
      %61 = sbr.rel (0) target = $region21
    $region20: #{tpu_custom_call.1} parent=1 // pred_region
      %62 = dma.done [#allocation5], 256
    $region21: #{tpu_custom_call.1} parent=1 // pred_fallthru
      _
    %63 = vsyncpa [#allocation4], 1
    %64 = vsyncpa [#allocation5], 1

</llo_original>
